<compile_context>
chip_gen: v5e
topology: v5e:2x2
jax: 0.10.0
libtpu: 0.0.40
codegen_flags: <defaults>
</compile_context>

<pallas_src>
import functools

import jax
import jax.numpy as jnp
from jax import lax
from jax.experimental import pallas as pl
from jax.experimental.pallas import tpu as pltpu


def _vq_kernel(xp_ref, wbdt_ref, wbd_ref, w2_ref, q_ref, stats_ref, *,
               n_valid, tnp, tiles_per_core, kp, nbands, dband, sq_width):
    """One (tnp, nbands*dband) packed row tile vs. the block-diagonal codebook.

    stats_ref block layout (8, nbands*kp), accumulated along the sequential axis:
      row 0 : per-(band, code) usage counts
      row 1 : per-lane partial sums of squared error (first sq_width lanes)
    """
    c = pl.program_id(0)          # core / parallel axis
    i = pl.program_id(1)          # sequential tile axis (reduction into stats)

    pw = nbands * dband           # packed row width (128 in the common case)
    kp4 = nbands * kp

    @pl.when(i == 0)
    def _():
        stats_ref[...] = jnp.zeros_like(stats_ref)

    x = xp_ref[...].astype(jnp.float32)                    # (tnp, pw)
    w2h = w2_ref[...]                                       # (1, kp4)  0.5|w|^2 (1e30 pad)

    # Distances up to a per-row constant and positive scale (argmin-invariant).
    xw = jnp.dot(x, wbdt_ref[...],
                 preferred_element_type=jnp.float32)        # (tnp, kp4)  MXU
    dist = w2h - xw

    # First-occurrence argmin per 128-lane code band -> one-hot encodings.
    code_iota = lax.broadcasted_iota(jnp.int32, (tnp, kp), 1)
    encs = []
    for j in range(nbands):
        dj = dist[:, j * kp:(j + 1) * kp]
        dmin = jnp.min(dj, axis=1, keepdims=True)
        idx = jnp.min(jnp.where(dj == dmin, code_iota, kp),
                      axis=1, keepdims=True)
        encs.append((code_iota == idx).astype(jnp.float32))
    enc = encs[0] if nbands == 1 else jnp.concatenate(encs, axis=1)   # (tnp, kp4)

    # Quantized packed rows (forward value of the straight-through estimator).
    q = jnp.dot(enc, wbd_ref[...],
                preferred_element_type=jnp.float32)         # (tnp, pw)  MXU
    q_ref[...] = q.astype(q_ref.dtype)

    # ---- statistics ---------------------------------------------------------
    def _accumulate(enc_eff, diff):
        stats_ref[0:1, :] += jnp.sum(enc_eff, axis=0, keepdims=True)   # counts
        sq = jnp.sum(diff * diff, axis=0, keepdims=True)               # (1, pw)
        if sq_width == 1:
            sq = jnp.sum(sq, axis=1, keepdims=True)                    # (1, 1)
        stats_ref[1:2, 0:sq_width] += sq

    tile_p0 = (c * tiles_per_core + i) * tnp            # logical first packed row
    tile_full = (tile_p0 + tnp) * nbands <= n_valid     # every original row valid?

    @pl.when(tile_full)
    def _():
        _accumulate(enc, q - x)

    @pl.when(jnp.logical_not(tile_full))
    def _():
        # Band-granular mask of original rows >= n_valid: ragged tail rows, the
        # sub-row packing pad, and (on a duplicated clamp block) everything.
        prow = lax.broadcasted_iota(jnp.int32, (tnp, 1), 0) + tile_p0
        lane_x = lax.broadcasted_iota(jnp.int32, (tnp, pw), 1)
        lane_e = lax.broadcasted_iota(jnp.int32, (tnp, kp4), 1)
        band_x = jnp.zeros((tnp, pw), jnp.int32)
        band_e = jnp.zeros((tnp, kp4), jnp.int32)
        for j in range(1, nbands):                         # no int division needed
            band_x += (lane_x >= j * dband).astype(jnp.int32)
            band_e += (lane_e >= j * kp).astype(jnp.int32)
        valid_x = (prow * nbands + band_x) < n_valid                       # bool
        valid_e = ((prow * nbands + band_e) < n_valid).astype(jnp.float32)
        diff = jnp.where(valid_x, q - x, 0.0)       # NaN-safe for garbage rows
        _accumulate(enc * valid_e, diff)


def _default_num_cores():
    try:
        kind = jax.devices()[0].device_kind.lower()
    except Exception:
        return 1
    # 2 TensorCores worth sharding over: v7x (and megacore v4/v5p); v5e/v6e are 1 TC.
    return 2 if any(t in kind for t in ("v7", "tpu7", "v5p", "v4")) else 1


def vector_quantize(inputs, embedding_weight, commitment_cost, *,
                    tile_n=256, num_cores=None):
    """inputs: (..., D), embedding_weight: (K, D).

    Returns (quantized, loss, perplexity) matching the PyTorch forward semantics.
    """
    input_shape = inputs.shape
    k, d = embedding_weight.shape
    flat = inputs.reshape(-1, d)                  # native dtype — no upcast copy
    n = flat.shape[0]

    # ---- row packing: nbands original rows per 128-lane packed row ------------
    nbands = 128 // d if (d <= 128 and 128 % d == 0) else 1
    pw = nbands * d
    n4 = -(-n // nbands) * nbands
    if n4 > n:                                    # tiny tail pad so rows pack evenly
        flat = jnp.pad(flat, ((0, n4 - n), (0, 0)))
    np_rows = n4 // nbands
    xp = flat.reshape(np_rows, pw)                # contiguous reshape (free)

    # ---- codebook prep: block-diagonal over bands, 0.5|w|^2 hoisted -----------
    kp = -(-k // 128) * 128
    kp4 = nbands * kp
    w = embedding_weight.astype(jnp.float32)
    wbd = jnp.zeros((kp4, pw), jnp.float32)
    for j in range(nbands):
        wbd = wbd.at[j * kp:j * kp + k, j * d:(j + 1) * d].set(w)
    wbdt = wbd.T                                  # (pw, kp4)
    w2_band = jnp.full((kp,), 1e30, jnp.float32).at[:k].set(
        0.5 * jnp.sum(w * w, axis=1))
    w2row = jnp.tile(w2_band, (nbands,)).reshape(1, kp4)

    # ---- tiling / grid ---------------------------------------------------------
    tnp = -(-max(int(tile_n), 1) // nbands)
    tnp = -(-tnp // 16) * 16
    tnp = max(16, min(tnp, -(-np_rows // 16) * 16))
    t_total = -(-np_rows // tnp)                  # row tiles (ragged edge handled)
    c = _default_num_cores() if num_cores is None else int(num_cores)
    c = max(1, min(c, t_total))
    tiles_per_core = -(-t_total // c)

    sq_width = pw if (pw % 128 == 0 and pw <= kp4) else 1

    kernel = functools.partial(
        _vq_kernel, n_valid=n, tnp=tnp, tiles_per_core=tiles_per_core,
        kp=kp, nbands=nbands, dband=d, sq_width=sq_width)

    def xq_index_map(cc, i):
        # Clamp: when t_total % c != 0 the spare step recomputes the last tile
        # (its stats are fully masked out; the q rewrite is idempotent).
        return (jnp.minimum(cc * tiles_per_core + i, t_total - 1), 0)

    itemsize = jnp.dtype(inputs.dtype).itemsize
    est_bytes = (2 * kp4 * pw * 4 + kp4 * 4 + 2 * 8 * kp4 * 4
                 + 2 * 2 * tnp * pw * itemsize            # double-buffered x & q tiles
                 + 4 * tnp * kp4 * 4 + 3 * tnp * pw * 4)  # dist/enc/iota + row temps
    vmem_limit = int(min(max(2 * est_bytes, 8 * 1024 * 1024), 32 * 1024 * 1024))

    q_packed, stats = pl.pallas_call(
        kernel,
        out_shape=(
            jax.ShapeDtypeStruct((np_rows, pw), inputs.dtype),
            jax.ShapeDtypeStruct((c * 8, kp4), jnp.float32),
        ),
        grid_spec=pltpu.PrefetchScalarGridSpec(
            num_scalar_prefetch=0,
            grid=(c, tiles_per_core),
            in_specs=[
                pl.BlockSpec((tnp, pw), xq_index_map),
                pl.BlockSpec((pw, kp4), lambda cc, i: (0, 0)),   # resident W_bd^T
                pl.BlockSpec((kp4, pw), lambda cc, i: (0, 0)),   # resident W_bd
                pl.BlockSpec((1, kp4), lambda cc, i: (0, 0)),    # resident 0.5|w|^2
            ],
            out_specs=[
                pl.BlockSpec((tnp, pw), xq_index_map),
                pl.BlockSpec((8, kp4), lambda cc, i: (cc, 0)),   # per-core stats
            ],
        ),
        compiler_params=pltpu.CompilerParams(
            dimension_semantics=("parallel", "arbitrary"),
            vmem_limit_bytes=vmem_limit),
    )(xp, wbdt, wbd, w2row)

    # ---- tiny JAX epilogue: fold bands/cores, finalize loss & perplexity -------
    stats = stats.reshape(c, 8, kp4)
    counts = stats[:, 0, :].sum(axis=0).reshape(nbands, kp).sum(axis=0)[:k]
    sqerr = jnp.sum(stats[:, 1, :])
    mse = sqerr / jnp.float32(n * d)
    loss = (1.0 + commitment_cost) * mse            # q_latent + cc * e_latent
    avg_probs = counts / jnp.float32(n)
    perplexity = jnp.exp(-jnp.sum(avg_probs * jnp.log(avg_probs + 1e-10)))

    quantized = q_packed.reshape(np_rows * nbands, d)[:n].reshape(input_shape)
    return quantized, loss, perplexity


if __name__ == "__main__":
    # Module hyper-params (sample_tokens is unused in forward()).
    num_embeddings = 64
    embedding_dim = 32
    commitment_cost = 0.25

    key = jax.random.PRNGKey(0)
    k_w, k_x = jax.random.split(key)

    # nn.Embedding init: uniform(-1/K, 1/K).
    embedding_weight = jax.random.uniform(
        k_w, (num_embeddings, embedding_dim),
        minval=-1.0 / num_embeddings, maxval=1.0 / num_embeddings,
        dtype=jnp.float32)

    # Example input: (batch=2, seq=8, embedding_dim=32) -> N = 16 flattened rows.
    x = jax.random.normal(k_x, (2, 8, embedding_dim), dtype=jnp.float32) * 0.05

    quantized, loss, perplexity = vector_quantize(
        x, embedding_weight, commitment_cost)
    jax.block_until_ready((quantized, loss, perplexity))

    # Pure-JAX reference for a sanity check.
    flat = x.reshape(-1, embedding_dim)
    d2 = (jnp.sum(flat * flat, axis=1, keepdims=True)
          + jnp.sum(embedding_weight ** 2, axis=1)
          - 2.0 * flat @ embedding_weight.T)
    ridx = jnp.argmin(d2, axis=1)
    renc = jax.nn.one_hot(ridx, num_embeddings, dtype=jnp.float32)
    rq = (renc @ embedding_weight).reshape(x.shape)
    rloss = (1.0 + commitment_cost) * jnp.mean((rq - x) ** 2)
    ravg = jnp.mean(renc, axis=0)
    rperp = jnp.exp(-jnp.sum(ravg * jnp.log(ravg + 1e-10)))

    assert quantized.shape == x.shape
    assert loss.shape == () and perplexity.shape == ()
    assert jnp.allclose(quantized, rq, atol=1e-5, rtol=1e-4)
    assert jnp.allclose(loss, rloss, atol=1e-6, rtol=1e-4)
    assert jnp.allclose(perplexity, rperp, atol=1e-4, rtol=1e-4)
    print("KERNEL_OK")
</pallas_src>

<mosaic_0001>
module attributes {stable_mosaic.version = 11 : i64} {
  func.func @_vq_kernel(%arg0: i32, %arg1: i32, %arg2: memref<16x128xf32, #tpu.memory_space<vmem>>, %arg3: memref<128x512xf32, #tpu.memory_space<vmem>>, %arg4: memref<512x128xf32, #tpu.memory_space<vmem>>, %arg5: memref<1x512xf32, #tpu.memory_space<vmem>>, %arg6: memref<16x128xf32, #tpu.memory_space<vmem>>, %arg7: memref<8x512xf32, #tpu.memory_space<vmem>>) attributes {dimension_semantics = [#tpu.dimension_semantics<parallel>, #tpu.dimension_semantics<arbitrary>], iteration_bounds = array<i64: 1, 1>, scalar_prefetch = 0 : i64, scratch_operands = 0 : i64, tpu.core_type = #tpu.core_type<tc>, window_params = [{transform_indices = @transform_0, window_bounds = array<i64: 16, 128>}, {pipeline_mode = #tpu.pipeline_mode<synchronous>, transform_indices = @transform_1, window_bounds = array<i64: 128, 512>}, {pipeline_mode = #tpu.pipeline_mode<synchronous>, transform_indices = @transform_2, window_bounds = array<i64: 512, 128>}, {pipeline_mode = #tpu.pipeline_mode<synchronous>, transform_indices = @transform_3, window_bounds = array<i64: 1, 512>}, {transform_indices = @transform_4, window_bounds = array<i64: 16, 128>}, {transform_indices = @transform_5, window_bounds = array<i64: 8, 512>}]} {
    %c0_i32 = arith.constant 0 : i32
    %0 = arith.cmpi eq, %arg1, %c0_i32 : i32
    %1 = arith.extui %0 : i1 to i32
    %c0_i32_0 = arith.constant 0 : i32
    %2 = arith.cmpi ne, %1, %c0_i32_0 : i32
    scf.if %2 {
      %cst_26 = arith.constant 0.000000e+00 : f32
      %77 = vector.broadcast %cst_26 : f32 to vector<8x512xf32>
      %c0_27 = arith.constant 0 : index
      %c0_28 = arith.constant 0 : index
      %78 = vector.load %arg7[%c0_27, %c0_28] : memref<8x512xf32, #tpu.memory_space<vmem>>, vector<8x512xf32>
      tpu.vector_store %arg7[%c0_27, %c0_28], %77 {strides = array<i32>} : memref<8x512xf32, #tpu.memory_space<vmem>>, vector<8x512xf32>,
    } else {
    }
    %c0 = arith.constant 0 : index
    %c0_1 = arith.constant 0 : index
    %3 = vector.load %arg2[%c0, %c0_1] : memref<16x128xf32, #tpu.memory_space<vmem>>, vector<16x128xf32>
    %c0_2 = arith.constant 0 : index
    %c0_3 = arith.constant 0 : index
    %4 = vector.load %arg5[%c0_2, %c0_3] : memref<1x512xf32, #tpu.memory_space<vmem>>, vector<1x512xf32>
    %c0_4 = arith.constant 0 : index
    %c0_5 = arith.constant 0 : index
    %5 = vector.load %arg3[%c0_4, %c0_5] : memref<128x512xf32, #tpu.memory_space<vmem>>, vector<128x512xf32>
    %cst = arith.constant dense<0.000000e+00> : vector<16x512xf32>
    %6 = tpu.matmul %3, %5, %cst {dimension_numbers = #tpu.dot_dimension_numbers<[1], [0], [0], [1], [0, 0, 1, 1], [], []>} : vector<16x128xf32>, vector<128x512xf32>, vector<16x512xf32> -> vector<16x512xf32>
    %7 = vector.broadcast %4 : vector<1x512xf32> to vector<16x512xf32>
    %8 = arith.subf %7, %6 : vector<16x512xf32>
    %9 = tpu.iota {dimensions = array<i32: 1>} : vector<16x128xi32>
    %10 = vector.extract_strided_slice %8 {offsets = [0, 0], sizes = [16, 128], strides = [1, 1]} : vector<16x512xf32> to vector<16x128xf32>
    %cst_6 = arith.constant dense<0x7F800000> : vector<16xf32>
    %11 = vector.multi_reduction <minimumf>, %10, %cst_6 [1] : vector<16x128xf32> to vector<16xf32>
    %12 = vector.shape_cast %11 : vector<16xf32> to vector<16x1xf32>
    %13 = vector.broadcast %12 : vector<16x1xf32> to vector<16x128xf32>
    %14 = arith.cmpf oeq, %10, %13 : vector<16x128xf32>
    %c128_i32 = arith.constant 128 : i32
    %15 = vector.broadcast %c128_i32 : i32 to vector<16x128xi32>
    %16 = arith.select %14, %9, %15 : vector<16x128xi1>, vector<16x128xi32>
    %cst_7 = arith.constant dense<2147483647> : vector<16xi32>
    %17 = vector.multi_reduction <minsi>, %16, %cst_7 [1] : vector<16x128xi32> to vector<16xi32>
    %18 = vector.shape_cast %17 : vector<16xi32> to vector<16x1xi32>
    %19 = vector.broadcast %18 : vector<16x1xi32> to vector<16x128xi32>
    %20 = arith.cmpi eq, %9, %19 : vector<16x128xi32>
    %21 = arith.extui %20 : vector<16x128xi1> to vector<16x128xi32>
    %22 = arith.sitofp %21 : vector<16x128xi32> to vector<16x128xf32>
    %23 = vector.extract_strided_slice %8 {offsets = [0, 128], sizes = [16, 128], strides = [1, 1]} : vector<16x512xf32> to vector<16x128xf32>
    %cst_8 = arith.constant dense<0x7F800000> : vector<16xf32>
    %24 = vector.multi_reduction <minimumf>, %23, %cst_8 [1] : vector<16x128xf32> to vector<16xf32>
    %25 = vector.shape_cast %24 : vector<16xf32> to vector<16x1xf32>
    %26 = vector.broadcast %25 : vector<16x1xf32> to vector<16x128xf32>
    %27 = arith.cmpf oeq, %23, %26 : vector<16x128xf32>
    %c128_i32_9 = arith.constant 128 : i32
    %28 = vector.broadcast %c128_i32_9 : i32 to vector<16x128xi32>
    %29 = arith.select %27, %9, %28 : vector<16x128xi1>, vector<16x128xi32>
    %cst_10 = arith.constant dense<2147483647> : vector<16xi32>
    %30 = vector.multi_reduction <minsi>, %29, %cst_10 [1] : vector<16x128xi32> to vector<16xi32>
    %31 = vector.shape_cast %30 : vector<16xi32> to vector<16x1xi32>
    %32 = vector.broadcast %31 : vector<16x1xi32> to vector<16x128xi32>
    %33 = arith.cmpi eq, %9, %32 : vector<16x128xi32>
    %34 = arith.extui %33 : vector<16x128xi1> to vector<16x128xi32>
    %35 = arith.sitofp %34 : vector<16x128xi32> to vector<16x128xf32>
    %36 = vector.extract_strided_slice %8 {offsets = [0, 256], sizes = [16, 128], strides = [1, 1]} : vector<16x512xf32> to vector<16x128xf32>
    %cst_11 = arith.constant dense<0x7F800000> : vector<16xf32>
    %37 = vector.multi_reduction <minimumf>, %36, %cst_11 [1] : vector<16x128xf32> to vector<16xf32>
    %38 = vector.shape_cast %37 : vector<16xf32> to vector<16x1xf32>
    %39 = vector.broadcast %38 : vector<16x1xf32> to vector<16x128xf32>
    %40 = arith.cmpf oeq, %36, %39 : vector<16x128xf32>
    %c128_i32_12 = arith.constant 128 : i32
    %41 = vector.broadcast %c128_i32_12 : i32 to vector<16x128xi32>
    %42 = arith.select %40, %9, %41 : vector<16x128xi1>, vector<16x128xi32>
    %cst_13 = arith.constant dense<2147483647> : vector<16xi32>
    %43 = vector.multi_reduction <minsi>, %42, %cst_13 [1] : vector<16x128xi32> to vector<16xi32>
    %44 = vector.shape_cast %43 : vector<16xi32> to vector<16x1xi32>
    %45 = vector.broadcast %44 : vector<16x1xi32> to vector<16x128xi32>
    %46 = arith.cmpi eq, %9, %45 : vector<16x128xi32>
    %47 = arith.extui %46 : vector<16x128xi1> to vector<16x128xi32>
    %48 = arith.sitofp %47 : vector<16x128xi32> to vector<16x128xf32>
    %49 = vector.extract_strided_slice %8 {offsets = [0, 384], sizes = [16, 128], strides = [1, 1]} : vector<16x512xf32> to vector<16x128xf32>
    %cst_14 = arith.constant dense<0x7F800000> : vector<16xf32>
    %50 = vector.multi_reduction <minimumf>, %49, %cst_14 [1] : vector<16x128xf32> to vector<16xf32>
    %51 = vector.shape_cast %50 : vector<16xf32> to vector<16x1xf32>
    %52 = vector.broadcast %51 : vector<16x1xf32> to vector<16x128xf32>
    %53 = arith.cmpf oeq, %49, %52 : vector<16x128xf32>
    %c128_i32_15 = arith.constant 128 : i32
    %54 = vector.broadcast %c128_i32_15 : i32 to vector<16x128xi32>
    %55 = arith.select %53, %9, %54 : vector<16x128xi1>, vector<16x128xi32>
    %cst_16 = arith.constant dense<2147483647> : vector<16xi32>
    %56 = vector.multi_reduction <minsi>, %55, %cst_16 [1] : vector<16x128xi32> to vector<16xi32>
    %57 = vector.shape_cast %56 : vector<16xi32> to vector<16x1xi32>
    %58 = vector.broadcast %57 : vector<16x1xi32> to vector<16x128xi32>
    %59 = arith.cmpi eq, %9, %58 : vector<16x128xi32>
    %60 = arith.extui %59 : vector<16x128xi1> to vector<16x128xi32>
    %61 = arith.sitofp %60 : vector<16x128xi32> to vector<16x128xf32>
    %62 = tpu.concatenate %22, %35, %48, %61 in 1 : vector<16x128xf32>, vector<16x128xf32>, vector<16x128xf32>, vector<16x128xf32> -> vector<16x512xf32>
    %c0_17 = arith.constant 0 : index
    %c0_18 = arith.constant 0 : index
    %63 = vector.load %arg4[%c0_17, %c0_18] : memref<512x128xf32, #tpu.memory_space<vmem>>, vector<512x128xf32>
    %cst_19 = arith.constant dense<0.000000e+00> : vector<16x128xf32>
    %64 = tpu.matmul %62, %63, %cst_19 {dimension_numbers = #tpu.dot_dimension_numbers<[1], [0], [0], [1], [0, 0, 1, 1], [], []>} : vector<16x512xf32>, vector<512x128xf32>, vector<16x128xf32> -> vector<16x128xf32>
    %c0_20 = arith.constant 0 : index
    %c0_21 = arith.constant 0 : index
    %65 = vector.load %arg6[%c0_20, %c0_21] : memref<16x128xf32, #tpu.memory_space<vmem>>, vector<16x128xf32>
    tpu.vector_store %arg6[%c0_20, %c0_21], %64 {strides = array<i32>} : memref<16x128xf32, #tpu.memory_space<vmem>>, vector<16x128xf32>,
    %c1_i32 = arith.constant 1 : i32
    %66 = arith.muli %arg0, %c1_i32 : i32
    %67 = arith.addi %66, %arg1 : i32
    %c16_i32 = arith.constant 16 : i32
    %68 = arith.muli %67, %c16_i32 : i32
    %c16_i32_22 = arith.constant 16 : i32
    %69 = arith.addi %68, %c16_i32_22 : i32
    %c4_i32 = arith.constant 4 : i32
    %70 = arith.muli %69, %c4_i32 : i32
    %c16_i32_23 = arith.constant 16 : i32
    %71 = arith.cmpi sle, %70, %c16_i32_23 : i32
    %72 = arith.extui %71 : i1 to i32
    %c0_i32_24 = arith.constant 0 : i32
    %73 = arith.cmpi ne, %72, %c0_i32_24 : i32
    scf.if %73 {
      %77 = arith.subf %64, %3 : vector<16x128xf32>
      %c0_26 = arith.constant 0 : index
      %c0_27 = arith.constant 0 : index
      %78 = vector.load %arg7[%c0_26, %c0_27] : memref<8x512xf32, #tpu.memory_space<vmem>>, vector<1x512xf32>
      %cst_28 = arith.constant dense<0.000000e+00> : vector<512xf32>
      %79 = vector.multi_reduction <add>, %62, %cst_28 [0] : vector<16x512xf32> to vector<512xf32>
      %80 = vector.shape_cast %79 : vector<512xf32> to vector<1x512xf32>
      %81 = arith.addf %78, %80 : vector<1x512xf32>
      %c0_29 = arith.constant 0 : index
      %c0_30 = arith.constant 0 : index
      %82 = vector.load %arg7[%c0_29, %c0_30] : memref<8x512xf32, #tpu.memory_space<vmem>>, vector<1x512xf32>
      tpu.vector_store %arg7[%c0_29, %c0_30], %81 {strides = array<i32>} : memref<8x512xf32, #tpu.memory_space<vmem>>, vector<1x512xf32>,
      %83 = arith.mulf %77, %77 : vector<16x128xf32>
      %cst_31 = arith.constant dense<0.000000e+00> : vector<128xf32>
      %84 = vector.multi_reduction <add>, %83, %cst_31 [0] : vector<16x128xf32> to vector<128xf32>
      %85 = vector.shape_cast %84 : vector<128xf32> to vector<1x128xf32>
      %c1 = arith.constant 1 : index
      %c0_32 = arith.constant 0 : index
      %86 = vector.load %arg7[%c1, %c0_32] : memref<8x512xf32, #tpu.memory_space<vmem>>, vector<1x128xf32>
      %87 = arith.addf %86, %85 : vector<1x128xf32>
      %c1_33 = arith.constant 1 : index
      %c0_34 = arith.constant 0 : index
      %88 = vector.load %arg7[%c1_33, %c0_34] : memref<8x512xf32, #tpu.memory_space<vmem>>, vector<1x128xf32>
      tpu.vector_store %arg7[%c1_33, %c0_34], %87 {strides = array<i32>} : memref<8x512xf32, #tpu.memory_space<vmem>>, vector<1x128xf32>,
    } else {
    }
    %true = arith.constant true
    %74 = arith.xori %71, %true : i1
    %75 = arith.extui %74 : i1 to i32
    %c0_i32_25 = arith.constant 0 : i32
    %76 = arith.cmpi ne, %75, %c0_i32_25 : i32
    scf.if %76 {
      %77 = tpu.iota {dimensions = array<i32: 0>} : vector<16x1xi32>
      %78 = vector.broadcast %68 : i32 to vector<16x1xi32>
      %79 = arith.addi %77, %78 : vector<16x1xi32>
      %80 = tpu.iota {dimensions = array<i32: 1>} : vector<16x128xi32>
      %81 = tpu.iota {dimensions = array<i32: 1>} : vector<16x512xi32>
      %c0_i32_26 = arith.constant 0 : i32
      %82 = vector.broadcast %c0_i32_26 : i32 to vector<16x128xi32>
      %c0_i32_27 = arith.constant 0 : i32
      %83 = vector.broadcast %c0_i32_27 : i32 to vector<16x512xi32>
      %c32_i32 = arith.constant 32 : i32
      %84 = vector.broadcast %c32_i32 : i32 to vector<16x128xi32>
      %85 = arith.cmpi sge, %80, %84 : vector<16x128xi32>
      %86 = arith.extui %85 : vector<16x128xi1> to vector<16x128xi32>
      %87 = arith.addi %82, %86 : vector<16x128xi32>
      %c128_i32_28 = arith.constant 128 : i32
      %88 = vector.broadcast %c128_i32_28 : i32 to vector<16x512xi32>
      %89 = arith.cmpi sge, %81, %88 : vector<16x512xi32>
      %90 = arith.extui %89 : vector<16x512xi1> to vector<16x512xi32>
      %91 = arith.addi %83, %90 : vector<16x512xi32>
      %c64_i32 = arith.constant 64 : i32
      %92 = vector.broadcast %c64_i32 : i32 to vector<16x128xi32>
      %93 = arith.cmpi sge, %80, %92 : vector<16x128xi32>
      %94 = arith.extui %93 : vector<16x128xi1> to vector<16x128xi32>
      %95 = arith.addi %87, %94 : vector<16x128xi32>
      %c256_i32 = arith.constant 256 : i32
      %96 = vector.broadcast %c256_i32 : i32 to vector<16x512xi32>
      %97 = arith.cmpi sge, %81, %96 : vector<16x512xi32>
      %98 = arith.extui %97 : vector<16x512xi1> to vector<16x512xi32>
      %99 = arith.addi %91, %98 : vector<16x512xi32>
      %c96_i32 = arith.constant 96 : i32
      %100 = vector.broadcast %c96_i32 : i32 to vector<16x128xi32>
      %101 = arith.cmpi sge, %80, %100 : vector<16x128xi32>
      %102 = arith.extui %101 : vector<16x128xi1> to vector<16x128xi32>
      %103 = arith.addi %95, %102 : vector<16x128xi32>
      %c384_i32 = arith.constant 384 : i32
      %104 = vector.broadcast %c384_i32 : i32 to vector<16x512xi32>
      %105 = arith.cmpi sge, %81, %104 : vector<16x512xi32>
      %106 = arith.extui %105 : vector<16x512xi1> to vector<16x512xi32>
      %107 = arith.addi %99, %106 : vector<16x512xi32>
      %c4_i32_29 = arith.constant 4 : i32
      %108 = vector.broadcast %c4_i32_29 : i32 to vector<16x1xi32>
      %109 = arith.muli %79, %108 : vector<16x1xi32>
      %110 = vector.broadcast %109 : vector<16x1xi32> to vector<16x128xi32>
      %111 = arith.addi %110, %103 : vector<16x128xi32>
      %c16_i32_30 = arith.constant 16 : i32
      %112 = vector.broadcast %c16_i32_30 : i32 to vector<16x128xi32>
      %113 = arith.cmpi slt, %111, %112 : vector<16x128xi32>
      %c4_i32_31 = arith.constant 4 : i32
      %114 = vector.broadcast %c4_i32_31 : i32 to vector<16x1xi32>
      %115 = arith.muli %79, %114 : vector<16x1xi32>
      %116 = vector.broadcast %115 : vector<16x1xi32> to vector<16x512xi32>
      %117 = arith.addi %116, %107 : vector<16x512xi32>
      %c16_i32_32 = arith.constant 16 : i32
      %118 = vector.broadcast %c16_i32_32 : i32 to vector<16x512xi32>
      %119 = arith.cmpi slt, %117, %118 : vector<16x512xi32>
      %120 = arith.extui %119 : vector<16x512xi1> to vector<16x512xi32>
      %121 = arith.sitofp %120 : vector<16x512xi32> to vector<16x512xf32>
      %122 = arith.subf %64, %3 : vector<16x128xf32>
      %cst_33 = arith.constant 0.000000e+00 : f32
      %123 = vector.broadcast %cst_33 : f32 to vector<16x128xf32>
      %124 = arith.select %113, %122, %123 : vector<16x128xi1>, vector<16x128xf32>
      %125 = arith.mulf %62, %121 : vector<16x512xf32>
      %c0_34 = arith.constant 0 : index
      %c0_35 = arith.constant 0 : index
      %126 = vector.load %arg7[%c0_34, %c0_35] : memref<8x512xf32, #tpu.memory_space<vmem>>, vector<1x512xf32>
      %cst_36 = arith.constant dense<0.000000e+00> : vector<512xf32>
      %127 = vector.multi_reduction <add>, %125, %cst_36 [0] : vector<16x512xf32> to vector<512xf32>
      %128 = vector.shape_cast %127 : vector<512xf32> to vector<1x512xf32>
      %129 = arith.addf %126, %128 : vector<1x512xf32>
      %c0_37 = arith.constant 0 : index
      %c0_38 = arith.constant 0 : index
      %130 = vector.load %arg7[%c0_37, %c0_38] : memref<8x512xf32, #tpu.memory_space<vmem>>, vector<1x512xf32>
      tpu.vector_store %arg7[%c0_37, %c0_38], %129 {strides = array<i32>} : memref<8x512xf32, #tpu.memory_space<vmem>>, vector<1x512xf32>,
      %131 = arith.mulf %124, %124 : vector<16x128xf32>
      %cst_39 = arith.constant dense<0.000000e+00> : vector<128xf32>
      %132 = vector.multi_reduction <add>, %131, %cst_39 [0] : vector<16x128xf32> to vector<128xf32>
      %133 = vector.shape_cast %132 : vector<128xf32> to vector<1x128xf32>
      %c1 = arith.constant 1 : index
      %c0_40 = arith.constant 0 : index
      %134 = vector.load %arg7[%c1, %c0_40] : memref<8x512xf32, #tpu.memory_space<vmem>>, vector<1x128xf32>
      %135 = arith.addf %134, %133 : vector<1x128xf32>
      %c1_41 = arith.constant 1 : index
      %c0_42 = arith.constant 0 : index
      %136 = vector.load %arg7[%c1_41, %c0_42] : memref<8x512xf32, #tpu.memory_space<vmem>>, vector<1x128xf32>
      tpu.vector_store %arg7[%c1_41, %c0_42], %135 {strides = array<i32>} : memref<8x512xf32, #tpu.memory_space<vmem>>, vector<1x128xf32>,
    } else {
    }
    return
  }
  func.func @transform_0(%arg0: i32, %arg1: i32) -> (i32, i32) {
    %c1_i32 = arith.constant 1 : i32
    %0 = arith.muli %arg0, %c1_i32 : i32
    %1 = arith.addi %0, %arg1 : i32
    %c0_i32 = arith.constant 0 : i32
    %2 = arith.minsi %1, %c0_i32 : i32
    %c0_i32_0 = arith.constant 0 : i32
    %c0_i32_1 = arith.constant 0 : i32
    return %2, %c0_i32_0 : i32, i32
  }
  func.func @transform_1(%arg0: i32, %arg1: i32) -> (i32, i32) {
    %c0_i32 = arith.constant 0 : i32
    %c0_i32_0 = arith.constant 0 : i32
    %c0_i32_1 = arith.constant 0 : i32
    return %c0_i32, %c0_i32_0 : i32, i32
  }
  func.func @transform_2(%arg0: i32, %arg1: i32) -> (i32, i32) {
    %c0_i32 = arith.constant 0 : i32
    %c0_i32_0 = arith.constant 0 : i32
    %c0_i32_1 = arith.constant 0 : i32
    return %c0_i32, %c0_i32_0 : i32, i32
  }
  func.func @transform_3(%arg0: i32, %arg1: i32) -> (i32, i32) {
    %c0_i32 = arith.constant 0 : i32
    %c0_i32_0 = arith.constant 0 : i32
    %c0_i32_1 = arith.constant 0 : i32
    return %c0_i32, %c0_i32_0 : i32, i32
  }
  func.func @transform_4(%arg0: i32, %arg1: i32) -> (i32, i32) {
    %c1_i32 = arith.constant 1 : i32
    %0 = arith.muli %arg0, %c1_i32 : i32
    %1 = arith.addi %0, %arg1 : i32
    %c0_i32 = arith.constant 0 : i32
    %2 = arith.minsi %1, %c0_i32 : i32
    %c0_i32_0 = arith.constant 0 : i32
    %c0_i32_1 = arith.constant 0 : i32
    return %2, %c0_i32_0 : i32, i32
  }
  func.func @transform_5(%arg0: i32, %arg1: i32) -> (i32, i32) {
    %c0_i32 = arith.constant 0 : i32
    %c0_i32_0 = arith.constant 0 : i32
    return %arg0, %c0_i32 : i32, i32
  }
}

</mosaic_0001>

<llo_original>
// kernel: tpu_custom_call.1
$region0: #{tpu_custom_call.1}
  #allocation0 [shape = 'u32[]', space=smem, size = 0x4, offset = 0x4, fixed_abs, tag = 'smem constant byte address 0x4 - core index']
  #allocation1 [shape = 'u32[72,128]{1,0:T(1,128)}', space=vmem, size = 0x9000, scoped, tag = 'internal scratch']
  %s0 = inlined_call_operand.hbm [shape: f32[4,128], index: 0, kind: input, shape index: {}]
  %s1 = inlined_call_operand.hbm [shape: f32[128,512], index: 1, kind: input, shape index: {}]
  %s2 = inlined_call_operand.hbm [shape: f32[512,128], index: 2, kind: input, shape index: {}]
  %s3 = inlined_call_operand.hbm [shape: f32[1,512], index: 3, kind: input, shape index: {}]
  %s4 = inlined_call_operand.hbm [shape: f32[4,128], index: 4, kind: output, shape index: {0}]
  %s5 = inlined_call_operand.hbm [shape: f32[8,512], index: 5, kind: output, shape index: {1}]
  %6 = xla_tuple %s4, %s5
  %s7 = sld [smem:[#allocation0]]
  $region62: #{tpu_custom_call.1} parent=0
    _
  %s9 = ssub.s32 1, %s7
  %s10 = scalar_select 0, %s9, %s7
  $region1: #{tpu_custom_call.1} parent=0
    #allocation2 [shape = 'u8[8192]{0}', space=vmem, size = 0x2000, scoped, tag = 'input window, operand 0, single buffered']
    #allocation3 [shape = 's32[1]{0}', space=sflag, size = 0x4, scoped, tag = 'scoped memory for tpu_custom_call.1']
    #allocation4 [shape = 's32[1]{0}', space=sflag, size = 0x4, scoped, tag = 'scoped memory for tpu_custom_call.1']
    #allocation5 [shape = 'u8[262144]{0}', space=vmem, size = 0x40000, scoped, tag = 'input window, operand 1, single buffered']
    #allocation6 [shape = 's32[1]{0}', space=sflag, size = 0x4, scoped, tag = 'scoped memory for tpu_custom_call.1']
    #allocation7 [shape = 'u8[262144]{0}', space=vmem, size = 0x40000, scoped, tag = 'input window, operand 2, single buffered']
    #allocation8 [shape = 'u8[2048]{0}', space=vmem, size = 0x800, scoped, tag = 'input window, operand 3, single buffered']
    #allocation9 [shape = 's32[1]{0}', space=sflag, size = 0x4, scoped, tag = 'scoped memory for tpu_custom_call.1']
    #allocation10 [shape = 'u8[8192]{0}', space=vmem, size = 0x2000, scoped, tag = 'output window, operand 0, single buffered']
    #allocation11 [shape = 'u8[16384]{0}', space=vmem, size = 0x4000, scoped, tag = 'output window, operand 1, single buffered']
    #allocation12 [shape = 's32[1]{0}', space=sflag, size = 0x4, scoped, tag = 'scoped memory for tpu_custom_call.1']
    %11 = vsyncpa [#allocation3], 0
    %12 = vsyncpa [#allocation6], 0
    %13 = vsyncpa [#allocation9], 0
    %14 = vsyncpa [#allocation4], 0
    %15 = vsyncpa [#allocation12], 0
    // Predicated region
    $region2: #{tpu_custom_call.1} parent=1 // pred_check
      _
    $region3: #{tpu_custom_call.1} parent=1 // pred_check_branch
      %17 = sbr.rel (0) target = $region5
    $region4: #{tpu_custom_call.1} parent=1 // pred_region
      %s18 = sadd.s32 0, 0
      %p19 = scmp.lt.s32.totalorder %s18, 0
      %s20 = scalar_select %p19, %s18, 0
      %s21 = smul.u32 4, %s20
      %s22 = ssub.s32 1, %s21
      %s23 = smul.u32 4, %s22
      %s24 = ssub.s32 16, %s23
      %s25 = sshll.u32 %s24, 4
      %26 = vsyncadd [#allocation3], %s25
      %p27 = scmp.ne.s32.totalorder 0, %s23
      %s28 = smul.addr %s21, 4
      %s29 = scalar_lea.hbm %s0, %s28
      %s30 = smul.u32 4, %s22
      %s31 = sshll.u32 %s29, 4
      %s32 = int_to_ptr.hbm [resolvable:$true] %s31
      %s33 = sshll.u32 [#allocation2], 4
      %s34 = int_to_ptr.vmem [resolvable:$true] %s33
      %s35 = sshll.u32 %s30, 4
      %39 = dma.hbm_to_vmem [thread:$0]  (%p27), %s32, %s35, %s34, [#allocation3], 64, 64, 4
    $region5: #{tpu_custom_call.1} parent=1 // pred_fallthru
      _
    // Predicated region
    $region6: #{tpu_custom_call.1} parent=1 // pred_check
      _
    $region7: #{tpu_custom_call.1} parent=1 // pred_check_branch
      %41 = sbr.rel (0) target = $region9
    $region8: #{tpu_custom_call.1} parent=1 // pred_region
      %43 = vsyncadd [#allocation6], 0
      %s44 = sshll.u32 %s1, 4
      %s45 = int_to_ptr.hbm [resolvable:$true] %s44
      %s46 = sshll.u32 [#allocation5], 4
      %s47 = int_to_ptr.vmem [resolvable:$true] %s46
      %52 = dma.hbm_to_vmem [thread:$0]  %s45, 8192, %s47, [#allocation6], 512, 512, 32
    $region9: #{tpu_custom_call.1} parent=1 // pred_fallthru
      _
    // Predicated region
    $region10: #{tpu_custom_call.1} parent=1 // pred_check
      _
    $region11: #{tpu_custom_call.1} parent=1 // pred_check_branch
      %54 = sbr.rel (0) target = $region13
    $region12: #{tpu_custom_call.1} parent=1 // pred_region
      %56 = vsyncadd [#allocation6], 0
      %s57 = sshll.u32 %s2, 4
      %s58 = int_to_ptr.hbm [resolvable:$true] %s57
      %s59 = sshll.u32 [#allocation7], 4
      %s60 = int_to_ptr.vmem [resolvable:$true] %s59
      %65 = dma.hbm_to_vmem [thread:$0]  %s58, 8192, %s60, [#allocation6], 128, 128, 8
    $region13: #{tpu_custom_call.1} parent=1 // pred_fallthru
      _
    // Predicated region
    $region14: #{tpu_custom_call.1} parent=1 // pred_check
      _
    $region15: #{tpu_custom_call.1} parent=1 // pred_check_branch
      %67 = sbr.rel (0) target = $region17
    $region16: #{tpu_custom_call.1} parent=1 // pred_region
      %69 = vsyncadd [#allocation9], 0
      %s71 = sshll.u32 %s3, 4
      %s72 = int_to_ptr.hbm [resolvable:$true] %s71
      %s73 = sshll.u32 [#allocation8], 4
      %s74 = int_to_ptr.vmem [resolvable:$true] %s73
      %76 = dma.hbm_to_vmem [thread:$0]  %s72, 64, %s74, [#allocation9]
    $region17: #{tpu_custom_call.1} parent=1 // pred_fallthru
      _
    // Predicated region
    $region18: #{tpu_custom_call.1} parent=1 // pred_check
      _
    $region19: #{tpu_custom_call.1} parent=1 // pred_check_branch
      %78 = sbr.rel (0) target = $region21
    $region20: #{tpu_custom_call.1} parent=1 // pred_region
      %80 = dma.done [#allocation3], 256
    $region21: #{tpu_custom_call.1} parent=1 // pred_fallthru
      _
    // Predicated region
    $region22: #{tpu_custom_call.1} parent=1 // pred_check
      _
    $region23: #{tpu_custom_call.1} parent=1 // pred_check_branch
      %82 = sbr.rel (0) target = $region25
    $region24: #{tpu_custom_call.1} parent=1 // pred_region
      %84 = dma.done [#allocation6], 8192
    $region25: #{tpu_custom_call.1} parent=1 // pred_fallthru
      _
    // Predicated region
    $region26: #{tpu_custom_call.1} parent=1 // pred_check
      _
    $region27: #{tpu_custom_call.1} parent=1 // pred_check_branch
      %86 = sbr.rel (0) target = $region29
    $region28: #{tpu_custom_call.1} parent=1 // pred_region
      %88 = dma.done [#allocation6], 8192
    $region29: #{tpu_custom_call.1} parent=1 // pred_fallthru
      _
    // Predicated region
    $region30: #{tpu_custom_call.1} parent=1 // pred_check
      _
    $region31: #{tpu_custom_call.1} parent=1 // pred_check_branch
      %90 = sbr.rel (0) target = $region33
    $region32: #{tpu_custom_call.1} parent=1 // pred_region
      %92 = dma.done [#allocation9], 64
    $region33: #{tpu_custom_call.1} parent=1 // pred_fallthru
      _
    %s93 = sadd.s32 0, 0
    %p94 = scmp.lt.s32.totalorder %s93, 0
    %s95 = scalar_select %p94, %s93, 0
    %s96 = smul.u32 4, %s95
    %s97 = ssub.s32 1, %s96
    %s98 = smul.u32 4, %s97
    %s99 = sadd.s32 0, 0
    %p100 = scmp.lt.s32.totalorder %s99, 0
    %s101 = scalar_select %p100, %s99, 0
    %s102 = smul.u32 4, %s101
    %s103 = ssub.s32 1, %s102
    %s104 = smul.u32 4, %s103
    %p105 = scmp.eq.s32.totalorder 0, 0
    // Predicated region
    $region34: #{tpu_custom_call.1} parent=1 // pred_check
      %p106 = pneg %p105
    $region35: #{tpu_custom_call.1} parent=1 // pred_check_branch
      %108 = sbr.rel (%p106) target = $region37
    $region36: #{tpu_custom_call.1} parent=1 // pred_region
      %109 = vst [vmem:[#allocation11] sm:$0xff] 0.0
      %110 = vst [vmem:[#allocation11 + $0x8] sm:$0xff] 0.0
      %111 = vst [vmem:[#allocation11 + $0x10] sm:$0xff] 0.0
      %112 = vst [vmem:[#allocation11 + $0x18] sm:$0xff] 0.0
    $region37: #{tpu_custom_call.1} parent=1 // pred_fallthru
      _
    %v113 = vld [vmem:[#allocation2] sm:$0xff]
    %v114 = vld [vmem:[#allocation2 + $0x8] sm:$0xff]
    %v115 = vld [vmem:[#allocation8] sm:$0xf]
    %v116 = vld [vmem:[#allocation5] sm:$0xff]
    %v117 = vld [vmem:[#allocation5 + $0x8] sm:$0xff]
    %v118 = vld [vmem:[#allocation5 + $0x10] sm:$0xff]
    %v119 = vld [vmem:[#allocation5 + $0x18] sm:$0xff]
    %v120 = vld [vmem:[#allocation5 + $0x20] sm:$0xff]
    %v121 = vld [vmem:[#allocation5 + $0x28] sm:$0xff]
    %v122 = vld [vmem:[#allocation5 + $0x30] sm:$0xff]
    %v123 = vld [vmem:[#allocation5 + $0x38] sm:$0xff]
    %v124 = vld [vmem:[#allocation5 + $0x40] sm:$0xff]
    %v125 = vld [vmem:[#allocation5 + $0x48] sm:$0xff]
    %v126 = vld [vmem:[#allocation5 + $0x50] sm:$0xff]
    %v127 = vld [vmem:[#allocation5 + $0x58] sm:$0xff]
    %v128 = vld [vmem:[#allocation5 + $0x60] sm:$0xff]
    %v129 = vld [vmem:[#allocation5 + $0x68] sm:$0xff]
    %v130 = vld [vmem:[#allocation5 + $0x70] sm:$0xff]
    %v131 = vld [vmem:[#allocation5 + $0x78] sm:$0xff]
    %v132 = vld [vmem:[#allocation5 + $0x80] sm:$0xff]
    %v133 = vld [vmem:[#allocation5 + $0x88] sm:$0xff]
    %v134 = vld [vmem:[#allocation5 + $0x90] sm:$0xff]
    %v135 = vld [vmem:[#allocation5 + $0x98] sm:$0xff]
    %v136 = vld [vmem:[#allocation5 + $0xa0] sm:$0xff]
    %v137 = vld [vmem:[#allocation5 + $0xa8] sm:$0xff]
    %v138 = vld [vmem:[#allocation5 + $0xb0] sm:$0xff]
    %v139 = vld [vmem:[#allocation5 + $0xb8] sm:$0xff]
    %v140 = vld [vmem:[#allocation5 + $0xc0] sm:$0xff]
    %v141 = vld [vmem:[#allocation5 + $0xc8] sm:$0xff]
    %v142 = vld [vmem:[#allocation5 + $0xd0] sm:$0xff]
    %v143 = vld [vmem:[#allocation5 + $0xd8] sm:$0xff]
    %v144 = vld [vmem:[#allocation5 + $0xe0] sm:$0xff]
    %v145 = vld [vmem:[#allocation5 + $0xe8] sm:$0xff]
    %v146 = vld [vmem:[#allocation5 + $0xf0] sm:$0xff]
    %v147 = vld [vmem:[#allocation5 + $0xf8] sm:$0xff]
    %v148 = vld [vmem:[#allocation5 + $0x100] sm:$0xff]
    %v149 = vld [vmem:[#allocation5 + $0x108] sm:$0xff]
    %v150 = vld [vmem:[#allocation5 + $0x110] sm:$0xff]
    %v151 = vld [vmem:[#allocation5 + $0x118] sm:$0xff]
    %v152 = vld [vmem:[#allocation5 + $0x120] sm:$0xff]
    %v153 = vld [vmem:[#allocation5 + $0x128] sm:$0xff]
    %v154 = vld [vmem:[#allocation5 + $0x130] sm:$0xff]
    %v155 = vld [vmem:[#allocation5 + $0x138] sm:$0xff]
    %v156 = vld [vmem:[#allocation5 + $0x140] sm:$0xff]
    %v157 = vld [vmem:[#allocation5 + $0x148] sm:$0xff]
    %v158 = vld [vmem:[#allocation5 + $0x150] sm:$0xff]
    %v159 = vld [vmem:[#allocation5 + $0x158] sm:$0xff]
    %v160 = vld [vmem:[#allocation5 + $0x160] sm:$0xff]
    %v161 = vld [vmem:[#allocation5 + $0x168] sm:$0xff]
    %v162 = vld [vmem:[#allocation5 + $0x170] sm:$0xff]
    %v163 = vld [vmem:[#allocation5 + $0x178] sm:$0xff]
    %v164 = vld [vmem:[#allocation5 + $0x180] sm:$0xff]
    %v165 = vld [vmem:[#allocation5 + $0x188] sm:$0xff]
    %v166 = vld [vmem:[#allocation5 + $0x190] sm:$0xff]
    %v167 = vld [vmem:[#allocation5 + $0x198] sm:$0xff]
    %v168 = vld [vmem:[#allocation5 + $0x1a0] sm:$0xff]
    %v169 = vld [vmem:[#allocation5 + $0x1a8] sm:$0xff]
    %v170 = vld [vmem:[#allocation5 + $0x1b0] sm:$0xff]
    %v171 = vld [vmem:[#allocation5 + $0x1b8] sm:$0xff]
    %v172 = vld [vmem:[#allocation5 + $0x1c0] sm:$0xff]
    %v173 = vld [vmem:[#allocation5 + $0x1c8] sm:$0xff]
    %v174 = vld [vmem:[#allocation5 + $0x1d0] sm:$0xff]
    %v175 = vld [vmem:[#allocation5 + $0x1d8] sm:$0xff]
    %v176 = vld [vmem:[#allocation5 + $0x1e0] sm:$0xff]
    %v177 = vld [vmem:[#allocation5 + $0x1e8] sm:$0xff]
    %v178 = vld [vmem:[#allocation5 + $0x1f0] sm:$0xff]
    %v179 = vld [vmem:[#allocation5 + $0x1f8] sm:$0xff]
    %180 = vmatpush.msra.mxu0 %v176
    %181 = vmatpush.msra.mxu0 %v172
    %182 = vmatpush.msra.mxu0 %v168
    %183 = vmatpush.msra.mxu0 %v164
    %184 = vmatpush.msra.mxu0 %v160
    %185 = vmatpush.msra.mxu0 %v156
    %186 = vmatpush.msra.mxu0 %v152
    %187 = vmatpush.msra.mxu0 %v148
    %188 = vmatpush.msra.mxu0 %v144
    %189 = vmatpush.msra.mxu0 %v140
    %190 = vmatpush.msra.mxu0 %v136
    %191 = vmatpush.msra.mxu0 %v132
    %192 = vmatpush.msra.mxu0 %v128
    %193 = vmatpush.msra.mxu0 %v124
    %194 = vmatpush.msra.mxu0 %v120
    %195 = vmatpush.msra.mxu0 %v116
    %196 = vmatmul.f32.gmra.mxu0 %v113
    %v197 = vpop.f32.mrf.mxu0
    %v198 = vadd.f32 0.0, %v197
    %199 = vmatmul.f32.gmra.mxu0 %v114
    %v200 = vpop.f32.mrf.mxu0
    %v201 = vadd.f32 0.0, %v200
    %202 = vdwg.mxu0
    %203 = vmatpush.msra.mxu0 %v177
    %204 = vmatpush.msra.mxu0 %v173
    %205 = vmatpush.msra.mxu0 %v169
    %206 = vmatpush.msra.mxu0 %v165
    %207 = vmatpush.msra.mxu0 %v161
    %208 = vmatpush.msra.mxu0 %v157
    %209 = vmatpush.msra.mxu0 %v153
    %210 = vmatpush.msra.mxu0 %v149
    %211 = vmatpush.msra.mxu0 %v145
    %212 = vmatpush.msra.mxu0 %v141
    %213 = vmatpush.msra.mxu0 %v137
    %214 = vmatpush.msra.mxu0 %v133
    %215 = vmatpush.msra.mxu0 %v129
    %216 = vmatpush.msra.mxu0 %v125
    %217 = vmatpush.msra.mxu0 %v121
    %218 = vmatpush.msra.mxu0 %v117
    %219 = vmatmul.f32.gmra.mxu0 %v113
    %v220 = vpop.f32.mrf.mxu0
    %v221 = vadd.f32 0.0, %v220
    %222 = vmatmul.f32.gmra.mxu0 %v114
    %v223 = vpop.f32.mrf.mxu0
    %v224 = vadd.f32 0.0, %v223
    %225 = vdwg.mxu0
    %226 = vmatpush.msra.mxu0 %v178
    %227 = vmatpush.msra.mxu0 %v174
    %228 = vmatpush.msra.mxu0 %v170
    %229 = vmatpush.msra.mxu0 %v166
    %230 = vmatpush.msra.mxu0 %v162
    %231 = vmatpush.msra.mxu0 %v158
    %232 = vmatpush.msra.mxu0 %v154
    %233 = vmatpush.msra.mxu0 %v150
    %234 = vmatpush.msra.mxu0 %v146
    %235 = vmatpush.msra.mxu0 %v142
    %236 = vmatpush.msra.mxu0 %v138
    %237 = vmatpush.msra.mxu0 %v134
    %238 = vmatpush.msra.mxu0 %v130
    %239 = vmatpush.msra.mxu0 %v126
    %240 = vmatpush.msra.mxu0 %v122
    %241 = vmatpush.msra.mxu0 %v118
    %242 = vmatmul.f32.gmra.mxu0 %v113
    %v243 = vpop.f32.mrf.mxu0
    %v244 = vadd.f32 0.0, %v243
    %245 = vmatmul.f32.gmra.mxu0 %v114
    %v246 = vpop.f32.mrf.mxu0
    %v247 = vadd.f32 0.0, %v246
    %248 = vdwg.mxu0
    %249 = vmatpush.msra.mxu0 %v179
    %250 = vmatpush.msra.mxu0 %v175
    %251 = vmatpush.msra.mxu0 %v171
    %252 = vmatpush.msra.mxu0 %v167
    %253 = vmatpush.msra.mxu0 %v163
    %254 = vmatpush.msra.mxu0 %v159
    %255 = vmatpush.msra.mxu0 %v155
    %256 = vmatpush.msra.mxu0 %v151
    %257 = vmatpush.msra.mxu0 %v147
    %258 = vmatpush.msra.mxu0 %v143
    %259 = vmatpush.msra.mxu0 %v139
    %260 = vmatpush.msra.mxu0 %v135
    %261 = vmatpush.msra.mxu0 %v131
    %262 = vmatpush.msra.mxu0 %v127
    %263 = vmatpush.msra.mxu0 %v123
    %264 = vmatpush.msra.mxu0 %v119
    %265 = vmatmul.f32.gmra.mxu0 %v113
    %v266 = vpop.f32.mrf.mxu0
    %v267 = vadd.f32 0.0, %v266
    %268 = vmatmul.f32.gmra.mxu0 %v114
    %v269 = vpop.f32.mrf.mxu0
    %v270 = vadd.f32 0.0, %v269
    %271 = vdwg.mxu0
    %v273 = vperm.slane %v115, 0
    %v274 = vperm.slane %v115, 1
    %v275 = vperm.slane %v115, 2
    %v276 = vperm.slane %v115, 3
    %v281 = vsub.f32 %v273, %v198
    %v282 = vsub.f32 %v274, %v221
    %v283 = vsub.f32 %v275, %v244
    %v284 = vsub.f32 %v276, %v267
    %v285 = vsub.f32 %v273, %v201
    %v286 = vsub.f32 %v274, %v224
    %v287 = vsub.f32 %v275, %v247
    %v288 = vsub.f32 %v276, %v270
    %v289 = vlaneseq
    %v290 = vand.u32 %v289, 127
    %291 = vmin.xlane.f32.xlu0 %v281
    %v292 = vpop.xlane.xlu0 %291
    %293 = vmin.xlane.f32.xlu0 %v285
    %v294 = vpop.xlane.xlu0 %293
    %vm295 = vcmp.eq.f32.partialorder %v281, %v292
    %vm296 = vcmp.eq.f32.partialorder %v285, %v294
    %v297 = vsel %vm295, %v290, 128
    %v298 = vsel %vm296, %v290, 128
    %v299 = vand.u32 %v297, 65535
    %v300 = vshra.s32 %v297, 16
    %v301 = vcvt.s32.f32 %v299
    %v302 = vcvt.s32.f32 %v300
    %303 = vmin.xlane.f32.xlu0 %v302
    %v304 = vpop.xlane.xlu0 %303
    %vm305 = vcmp.eq.f32.partialorder %v302, %v304
    %v306 = vsel %vm305, %v301, inf
    %307 = vmin.xlane.f32.xlu0 %v306
    %v308 = vpop.xlane.xlu0 %307
    %v309 = vcvt.f32.s32 %v308
    %v310 = vcvt.f32.s32 %v304
    %v311 = vshll.u32 %v310, 16
    %v312 = vadd.s32 %v311, %v309
    %v313 = vand.u32 %v298, 65535
    %v314 = vshra.s32 %v298, 16
    %v315 = vcvt.s32.f32 %v313
    %v316 = vcvt.s32.f32 %v314
    %317 = vmin.xlane.f32.xlu0 %v316
    %v318 = vpop.xlane.xlu0 %317
    %vm319 = vcmp.eq.f32.partialorder %v316, %v318
    %v320 = vsel %vm319, %v315, inf
    %321 = vmin.xlane.f32.xlu0 %v320
    %v322 = vpop.xlane.xlu0 %321
    %v323 = vcvt.f32.s32 %v322
    %v324 = vcvt.f32.s32 %v318
    %v325 = vshll.u32 %v324, 16
    %v326 = vadd.s32 %v325, %v323
    %vm327 = vcmp.eq.s32.totalorder %v290, %v312
    %vm328 = vcmp.eq.s32.totalorder %v290, %v326
    %v329 = vsel %vm327, 1, 0
    %v330 = vsel %vm328, 1, 0
    %v331 = vcvt.s32.f32 %v329
    %v332 = vcvt.s32.f32 %v330
    %333 = vmin.xlane.f32.xlu0 %v282
    %v334 = vpop.xlane.xlu0 %333
    %335 = vmin.xlane.f32.xlu0 %v286
    %v336 = vpop.xlane.xlu0 %335
    %vm337 = vcmp.eq.f32.partialorder %v282, %v334
    %vm338 = vcmp.eq.f32.partialorder %v286, %v336
    %v339 = vsel %vm337, %v290, 128
    %v340 = vsel %vm338, %v290, 128
    %v341 = vand.u32 %v339, 65535
    %v342 = vshra.s32 %v339, 16
    %v343 = vcvt.s32.f32 %v341
    %v344 = vcvt.s32.f32 %v342
    %345 = vmin.xlane.f32.xlu0 %v344
    %v346 = vpop.xlane.xlu0 %345
    %vm347 = vcmp.eq.f32.partialorder %v344, %v346
    %v348 = vsel %vm347, %v343, inf
    %349 = vmin.xlane.f32.xlu0 %v348
    %v350 = vpop.xlane.xlu0 %349
    %v351 = vcvt.f32.s32 %v350
    %v352 = vcvt.f32.s32 %v346
    %v353 = vshll.u32 %v352, 16
    %v354 = vadd.s32 %v353, %v351
    %v355 = vand.u32 %v340, 65535
    %v356 = vshra.s32 %v340, 16
    %v357 = vcvt.s32.f32 %v355
    %v358 = vcvt.s32.f32 %v356
    %359 = vmin.xlane.f32.xlu0 %v358
    %v360 = vpop.xlane.xlu0 %359
    %vm361 = vcmp.eq.f32.partialorder %v358, %v360
    %v362 = vsel %vm361, %v357, inf
    %363 = vmin.xlane.f32.xlu0 %v362
    %v364 = vpop.xlane.xlu0 %363
    %v365 = vcvt.f32.s32 %v364
    %v366 = vcvt.f32.s32 %v360
    %v367 = vshll.u32 %v366, 16
    %v368 = vadd.s32 %v367, %v365
    %vm369 = vcmp.eq.s32.totalorder %v290, %v354
    %vm370 = vcmp.eq.s32.totalorder %v290, %v368
    %v371 = vsel %vm369, 1, 0
    %v372 = vsel %vm370, 1, 0
    %v373 = vcvt.s32.f32 %v371
    %v374 = vcvt.s32.f32 %v372
    %375 = vmin.xlane.f32.xlu0 %v283
    %v376 = vpop.xlane.xlu0 %375
    %377 = vmin.xlane.f32.xlu0 %v287
    %v378 = vpop.xlane.xlu0 %377
    %vm379 = vcmp.eq.f32.partialorder %v283, %v376
    %vm380 = vcmp.eq.f32.partialorder %v287, %v378
    %v381 = vsel %vm379, %v290, 128
    %v382 = vsel %vm380, %v290, 128
    %v383 = vand.u32 %v381, 65535
    %v384 = vshra.s32 %v381, 16
    %v385 = vcvt.s32.f32 %v383
    %v386 = vcvt.s32.f32 %v384
    %387 = vmin.xlane.f32.xlu0 %v386
    %v388 = vpop.xlane.xlu0 %387
    %vm389 = vcmp.eq.f32.partialorder %v386, %v388
    %v390 = vsel %vm389, %v385, inf
    %391 = vmin.xlane.f32.xlu0 %v390
    %v392 = vpop.xlane.xlu0 %391
    %v393 = vcvt.f32.s32 %v392
    %v394 = vcvt.f32.s32 %v388
    %v395 = vshll.u32 %v394, 16
    %v396 = vadd.s32 %v395, %v393
    %v397 = vand.u32 %v382, 65535
    %v398 = vshra.s32 %v382, 16
    %v399 = vcvt.s32.f32 %v397
    %v400 = vcvt.s32.f32 %v398
    %401 = vmin.xlane.f32.xlu0 %v400
    %v402 = vpop.xlane.xlu0 %401
    %vm403 = vcmp.eq.f32.partialorder %v400, %v402
    %v404 = vsel %vm403, %v399, inf
    %405 = vmin.xlane.f32.xlu0 %v404
    %v406 = vpop.xlane.xlu0 %405
    %v407 = vcvt.f32.s32 %v406
    %v408 = vcvt.f32.s32 %v402
    %v409 = vshll.u32 %v408, 16
    %v410 = vadd.s32 %v409, %v407
    %vm411 = vcmp.eq.s32.totalorder %v290, %v396
    %vm412 = vcmp.eq.s32.totalorder %v290, %v410
    %v413 = vsel %vm411, 1, 0
    %v414 = vsel %vm412, 1, 0
    %v415 = vcvt.s32.f32 %v413
    %v416 = vcvt.s32.f32 %v414
    %417 = vmin.xlane.f32.xlu0 %v284
    %v418 = vpop.xlane.xlu0 %417
    %419 = vmin.xlane.f32.xlu0 %v288
    %v420 = vpop.xlane.xlu0 %419
    %vm421 = vcmp.eq.f32.partialorder %v284, %v418
    %vm422 = vcmp.eq.f32.partialorder %v288, %v420
    %v423 = vsel %vm421, %v290, 128
    %v424 = vsel %vm422, %v290, 128
    %v425 = vand.u32 %v423, 65535
    %v426 = vshra.s32 %v423, 16
    %v427 = vcvt.s32.f32 %v425
    %v428 = vcvt.s32.f32 %v426
    %429 = vmin.xlane.f32.xlu0 %v428
    %v430 = vpop.xlane.xlu0 %429
    %vm431 = vcmp.eq.f32.partialorder %v428, %v430
    %v432 = vsel %vm431, %v427, inf
    %433 = vmin.xlane.f32.xlu0 %v432
    %v434 = vpop.xlane.xlu0 %433
    %v435 = vcvt.f32.s32 %v434
    %v436 = vcvt.f32.s32 %v430
    %v437 = vshll.u32 %v436, 16
    %v438 = vadd.s32 %v437, %v435
    %v439 = vand.u32 %v424, 65535
    %v440 = vshra.s32 %v424, 16
    %v441 = vcvt.s32.f32 %v439
    %v442 = vcvt.s32.f32 %v440
    %443 = vmin.xlane.f32.xlu0 %v442
    %v444 = vpop.xlane.xlu0 %443
    %vm445 = vcmp.eq.f32.partialorder %v442, %v444
    %v446 = vsel %vm445, %v441, inf
    %447 = vmin.xlane.f32.xlu0 %v446
    %v448 = vpop.xlane.xlu0 %447
    %v449 = vcvt.f32.s32 %v448
    %v450 = vcvt.f32.s32 %v444
    %v451 = vshll.u32 %v450, 16
    %v452 = vadd.s32 %v451, %v449
    %vm453 = vcmp.eq.s32.totalorder %v290, %v438
    %vm454 = vcmp.eq.s32.totalorder %v290, %v452
    %v455 = vsel %vm453, 1, 0
    %v456 = vsel %vm454, 1, 0
    %v457 = vcvt.s32.f32 %v455
    %v458 = vcvt.s32.f32 %v456
    %v459 = vld [vmem:[#allocation7] sm:$0xff]
    %v460 = vld [vmem:[#allocation7 + $0x8] sm:$0xff]
    %v461 = vld [vmem:[#allocation7 + $0x10] sm:$0xff]
    %v462 = vld [vmem:[#allocation7 + $0x18] sm:$0xff]
    %v463 = vld [vmem:[#allocation7 + $0x20] sm:$0xff]
    %v464 = vld [vmem:[#allocation7 + $0x28] sm:$0xff]
    %v465 = vld [vmem:[#allocation7 + $0x30] sm:$0xff]
    %v466 = vld [vmem:[#allocation7 + $0x38] sm:$0xff]
    %v467 = vld [vmem:[#allocation7 + $0x40] sm:$0xff]
    %v468 = vld [vmem:[#allocation7 + $0x48] sm:$0xff]
    %v469 = vld [vmem:[#allocation7 + $0x50] sm:$0xff]
    %v470 = vld [vmem:[#allocation7 + $0x58] sm:$0xff]
    %v471 = vld [vmem:[#allocation7 + $0x60] sm:$0xff]
    %v472 = vld [vmem:[#allocation7 + $0x68] sm:$0xff]
    %v473 = vld [vmem:[#allocation7 + $0x70] sm:$0xff]
    %v474 = vld [vmem:[#allocation7 + $0x78] sm:$0xff]
    %v475 = vld [vmem:[#allocation7 + $0x80] sm:$0xff]
    %v476 = vld [vmem:[#allocation7 + $0x88] sm:$0xff]
    %v477 = vld [vmem:[#allocation7 + $0x90] sm:$0xff]
    %v478 = vld [vmem:[#allocation7 + $0x98] sm:$0xff]
    %v479 = vld [vmem:[#allocation7 + $0xa0] sm:$0xff]
    %v480 = vld [vmem:[#allocation7 + $0xa8] sm:$0xff]
    %v481 = vld [vmem:[#allocation7 + $0xb0] sm:$0xff]
    %v482 = vld [vmem:[#allocation7 + $0xb8] sm:$0xff]
    %v483 = vld [vmem:[#allocation7 + $0xc0] sm:$0xff]
    %v484 = vld [vmem:[#allocation7 + $0xc8] sm:$0xff]
    %v485 = vld [vmem:[#allocation7 + $0xd0] sm:$0xff]
    %v486 = vld [vmem:[#allocation7 + $0xd8] sm:$0xff]
    %v487 = vld [vmem:[#allocation7 + $0xe0] sm:$0xff]
    %v488 = vld [vmem:[#allocation7 + $0xe8] sm:$0xff]
    %v489 = vld [vmem:[#allocation7 + $0xf0] sm:$0xff]
    %v490 = vld [vmem:[#allocation7 + $0xf8] sm:$0xff]
    %v491 = vld [vmem:[#allocation7 + $0x100] sm:$0xff]
    %v492 = vld [vmem:[#allocation7 + $0x108] sm:$0xff]
    %v493 = vld [vmem:[#allocation7 + $0x110] sm:$0xff]
    %v494 = vld [vmem:[#allocation7 + $0x118] sm:$0xff]
    %v495 = vld [vmem:[#allocation7 + $0x120] sm:$0xff]
    %v496 = vld [vmem:[#allocation7 + $0x128] sm:$0xff]
    %v497 = vld [vmem:[#allocation7 + $0x130] sm:$0xff]
    %v498 = vld [vmem:[#allocation7 + $0x138] sm:$0xff]
    %v499 = vld [vmem:[#allocation7 + $0x140] sm:$0xff]
    %v500 = vld [vmem:[#allocation7 + $0x148] sm:$0xff]
    %v501 = vld [vmem:[#allocation7 + $0x150] sm:$0xff]
    %v502 = vld [vmem:[#allocation7 + $0x158] sm:$0xff]
    %v503 = vld [vmem:[#allocation7 + $0x160] sm:$0xff]
    %v504 = vld [vmem:[#allocation7 + $0x168] sm:$0xff]
    %v505 = vld [vmem:[#allocation7 + $0x170] sm:$0xff]
    %v506 = vld [vmem:[#allocation7 + $0x178] sm:$0xff]
    %v507 = vld [vmem:[#allocation7 + $0x180] sm:$0xff]
    %v508 = vld [vmem:[#allocation7 + $0x188] sm:$0xff]
    %v509 = vld [vmem:[#allocation7 + $0x190] sm:$0xff]
    %v510 = vld [vmem:[#allocation7 + $0x198] sm:$0xff]
    %v511 = vld [vmem:[#allocation7 + $0x1a0] sm:$0xff]
    %v512 = vld [vmem:[#allocation7 + $0x1a8] sm:$0xff]
    %v513 = vld [vmem:[#allocation7 + $0x1b0] sm:$0xff]
    %v514 = vld [vmem:[#allocation7 + $0x1b8] sm:$0xff]
    %v515 = vld [vmem:[#allocation7 + $0x1c0] sm:$0xff]
    %v516 = vld [vmem:[#allocation7 + $0x1c8] sm:$0xff]
    %v517 = vld [vmem:[#allocation7 + $0x1d0] sm:$0xff]
    %v518 = vld [vmem:[#allocation7 + $0x1d8] sm:$0xff]
    %v519 = vld [vmem:[#allocation7 + $0x1e0] sm:$0xff]
    %v520 = vld [vmem:[#allocation7 + $0x1e8] sm:$0xff]
    %v521 = vld [vmem:[#allocation7 + $0x1f0] sm:$0xff]
    %v522 = vld [vmem:[#allocation7 + $0x1f8] sm:$0xff]
    %523 = vmatpush.msra.mxu0 %v474
    %524 = vmatpush.msra.mxu0 %v473
    %525 = vmatpush.msra.mxu0 %v472
    %526 = vmatpush.msra.mxu0 %v471
    %527 = vmatpush.msra.mxu0 %v470
    %528 = vmatpush.msra.mxu0 %v469
    %529 = vmatpush.msra.mxu0 %v468
    %530 = vmatpush.msra.mxu0 %v467
    %531 = vmatpush.msra.mxu0 %v466
    %532 = vmatpush.msra.mxu0 %v465
    %533 = vmatpush.msra.mxu0 %v464
    %534 = vmatpush.msra.mxu0 %v463
    %535 = vmatpush.msra.mxu0 %v462
    %536 = vmatpush.msra.mxu0 %v461
    %537 = vmatpush.msra.mxu0 %v460
    %538 = vmatpush.msra.mxu0 %v459
    %539 = vmatmul.f32.gmra.mxu0 %v331
    %v540 = vpop.f32.mrf.mxu0
    %v541 = vadd.f32 0.0, %v540
    %542 = vmatmul.f32.gmra.mxu0 %v332
    %v543 = vpop.f32.mrf.mxu0
    %v544 = vadd.f32 0.0, %v543
    %545 = vdwg.mxu0
    %546 = vmatpush.msra.mxu0 %v490
    %547 = vmatpush.msra.mxu0 %v489
    %548 = vmatpush.msra.mxu0 %v488
    %549 = vmatpush.msra.mxu0 %v487
    %550 = vmatpush.msra.mxu0 %v486
    %551 = vmatpush.msra.mxu0 %v485
    %552 = vmatpush.msra.mxu0 %v484
    %553 = vmatpush.msra.mxu0 %v483
    %554 = vmatpush.msra.mxu0 %v482
    %555 = vmatpush.msra.mxu0 %v481
    %556 = vmatpush.msra.mxu0 %v480
    %557 = vmatpush.msra.mxu0 %v479
    %558 = vmatpush.msra.mxu0 %v478
    %559 = vmatpush.msra.mxu0 %v477
    %560 = vmatpush.msra.mxu0 %v476
    %561 = vmatpush.msra.mxu0 %v475
    %562 = vmatmul.f32.gmra.mxu0 %v373
    %v563 = vpop.f32.mrf.mxu0
    %v564 = vadd.f32 %v541, %v563
    %565 = vmatmul.f32.gmra.mxu0 %v374
    %v566 = vpop.f32.mrf.mxu0
    %v567 = vadd.f32 %v544, %v566
    %568 = vdwg.mxu0
    %569 = vmatpush.msra.mxu0 %v506
    %570 = vmatpush.msra.mxu0 %v505
    %571 = vmatpush.msra.mxu0 %v504
    %572 = vmatpush.msra.mxu0 %v503
    %573 = vmatpush.msra.mxu0 %v502
    %574 = vmatpush.msra.mxu0 %v501
    %575 = vmatpush.msra.mxu0 %v500
    %576 = vmatpush.msra.mxu0 %v499
    %577 = vmatpush.msra.mxu0 %v498
    %578 = vmatpush.msra.mxu0 %v497
    %579 = vmatpush.msra.mxu0 %v496
    %580 = vmatpush.msra.mxu0 %v495
    %581 = vmatpush.msra.mxu0 %v494
    %582 = vmatpush.msra.mxu0 %v493
    %583 = vmatpush.msra.mxu0 %v492
    %584 = vmatpush.msra.mxu0 %v491
    %585 = vmatmul.f32.gmra.mxu0 %v415
    %v586 = vpop.f32.mrf.mxu0
    %v587 = vadd.f32 %v564, %v586
    %588 = vmatmul.f32.gmra.mxu0 %v416
    %v589 = vpop.f32.mrf.mxu0
    %v590 = vadd.f32 %v567, %v589
    %591 = vdwg.mxu0
    %592 = vmatpush.msra.mxu0 %v522
    %593 = vmatpush.msra.mxu0 %v521
    %594 = vmatpush.msra.mxu0 %v520
    %595 = vmatpush.msra.mxu0 %v519
    %596 = vmatpush.msra.mxu0 %v518
    %597 = vmatpush.msra.mxu0 %v517
    %598 = vmatpush.msra.mxu0 %v516
    %599 = vmatpush.msra.mxu0 %v515
    %600 = vmatpush.msra.mxu0 %v514
    %601 = vmatpush.msra.mxu0 %v513
    %602 = vmatpush.msra.mxu0 %v512
    %603 = vmatpush.msra.mxu0 %v511
    %604 = vmatpush.msra.mxu0 %v510
    %605 = vmatpush.msra.mxu0 %v509
    %606 = vmatpush.msra.mxu0 %v508
    %607 = vmatpush.msra.mxu0 %v507
    %608 = vmatmul.f32.gmra.mxu0 %v457
    %v609 = vpop.f32.mrf.mxu0
    %v610 = vadd.f32 %v587, %v609
    %611 = vmatmul.f32.gmra.mxu0 %v458
    %v612 = vpop.f32.mrf.mxu0
    %v613 = vadd.f32 %v590, %v612
    %614 = vdwg.mxu0
    %615 = vst [vmem:[#allocation10] sm:$0xff] %v610
    %616 = vst [vmem:[#allocation10 + $0x8] sm:$0xff] %v613
    %s617 = sadd.s32 0, 0
    %s618 = smul.u32 %s617, 16
    %s619 = sadd.s32 %s618, 16
    %s620 = smul.u32 %s619, 4
    %p621 = scmp.le.s32.totalorder %s620, 16
    // Predicated region
    $region38: #{tpu_custom_call.1} parent=1 // pred_check
      %p622 = pneg %p621
    $region39: #{tpu_custom_call.1} parent=1 // pred_check_branch
      %624 = sbr.rel (%p622) target = $region41
    $region40: #{tpu_custom_call.1} parent=1 // pred_region
      %v625 = vsub.f32 %v610, %v113
      %v626 = vsub.f32 %v613, %v114
      %v627 = vld [vmem:[#allocation11] ss:$8 sm:$0xf]
      %v628 = vadd.f32 %v331, %v332
      %v629 = vrot.slane %v628, 4
      %v630 = vadd.f32 %v628, %v629
      %v631 = vrot.slane %v630, 2
      %v632 = vadd.f32 %v630, %v631
      %v633 = vrot.slane %v632, 1
      %v634 = vadd.f32 %v632, %v633
      %v635 = vadd.f32 %v373, %v374
      %v636 = vrot.slane %v635, 4
      %v637 = vadd.f32 %v635, %v636
      %v638 = vrot.slane %v637, 2
      %v639 = vadd.f32 %v637, %v638
      %v640 = vrot.slane %v639, 1
      %v641 = vadd.f32 %v639, %v640
      %v642 = vadd.f32 %v415, %v416
      %v643 = vrot.slane %v642, 4
      %v644 = vadd.f32 %v642, %v643
      %v645 = vrot.slane %v644, 2
      %v646 = vadd.f32 %v644, %v645
      %v647 = vrot.slane %v646, 1
      %v648 = vadd.f32 %v646, %v647
      %v649 = vadd.f32 %v457, %v458
      %v650 = vrot.slane %v649, 4
      %v651 = vadd.f32 %v649, %v650
      %v652 = vrot.slane %v651, 2
      %v653 = vadd.f32 %v651, %v652
      %v654 = vrot.slane %v653, 1
      %v655 = vadd.f32 %v653, %v654
      %v660 = vrot.slane %v641, 7
      %v661 = vrot.slane %v648, 6
      %v662 = vrot.slane %v655, 5
      %vm663 = vcmask 1040384
      %v664 = vsel %vm663, %v634, %v660
      %vm665 = vcmask 1042434
      %v666 = vsel %vm665, %v661, %v662
      %vm667 = vcmask 1041408
      %v668 = vsel %vm667, %v664, %v666
      %v670 = vadd.f32 %v627, %v668
      %v671 = vlaneseq
      %vm672 = vcmp.ge.s32.totalorder %v671, 0
      %vm673 = vcmp.lt.s32.totalorder %v671, 512
      %vm674 = vmand %vm672, %vm673
      %675 = vst.msk [vmem:[#allocation11] ss:$8 sm:$0xf] %vm674, %v670
      %676 = vst.msk [vmem:[#allocation11] ss:$8 sm:$0x0] %vm674, %v670
      %v677 = vmul.f32 %v625, %v625
      %v678 = vmul.f32 %v626, %v626
      %v679 = vadd.f32 %v677, %v678
      %v680 = vrot.slane %v679, 4
      %v681 = vadd.f32 %v679, %v680
      %v682 = vrot.slane %v681, 2
      %v683 = vadd.f32 %v681, %v682
      %v684 = vrot.slane %v683, 1
      %v685 = vadd.f32 %v683, %v684
      %v686 = vld [vmem:[#allocation11 + $0x1] ss:$0 sm:$0xff]
      %v687 = vadd.f32 %v686, %v685
      %688 = vst [vmem:[#allocation11 + $0x1] sm:$0x1] %v687
    $region41: #{tpu_custom_call.1} parent=1 // pred_fallthru
      _
    %p689 = scmp.gt.s32.totalorder %s620, 16
    // Predicated region
    $region42: #{tpu_custom_call.1} parent=1 // pred_check
      %p690 = pneg %p689
    $region43: #{tpu_custom_call.1} parent=1 // pred_check_branch
      %692 = sbr.rel (%p690) target = $region45
    $region44: #{tpu_custom_call.1} parent=1 // pred_region
      %v693 = vlaneseq
      %v694 = vshrl.u32 %v693, 7
      %v695 = vadd.s32 %v694, 8
      %v696 = vstv %s618
      %v697 = vadd.s32 %v694, %v696
      %v698 = vadd.s32 %v695, %v696
      %v699 = vadd.s32 %v290, 128
      %v700 = vadd.s32 %v290, 256
      %v701 = vadd.s32 %v290, 384
      %vm702 = vcmp.ge.s32.totalorder %v290, 32
      %v703 = vsel %vm702, 1, 0
      %vm704 = vcmp.ge.s32.totalorder %v290, 128
      %vm705 = vcmp.ge.s32.totalorder %v699, 128
      %vm706 = vcmp.ge.s32.totalorder %v700, 128
      %vm707 = vcmp.ge.s32.totalorder %v701, 128
      %v708 = vsel %vm704, 1, 0
      %v709 = vsel %vm705, 1, 0
      %v710 = vsel %vm706, 1, 0
      %v711 = vsel %vm707, 1, 0
      %vm712 = vcmp.ge.s32.totalorder %v290, 64
      %v713 = vsel %vm712, 1, 0
      %v714 = vadd.s32 %v703, %v713
      %vm715 = vcmp.ge.s32.totalorder %v290, 256
      %vm716 = vcmp.ge.s32.totalorder %v699, 256
      %vm717 = vcmp.ge.s32.totalorder %v700, 256
      %vm718 = vcmp.ge.s32.totalorder %v701, 256
      %v719 = vsel %vm715, 1, 0
      %v720 = vsel %vm716, 1, 0
      %v721 = vsel %vm717, 1, 0
      %v722 = vsel %vm718, 1, 0
      %v723 = vadd.s32 %v708, %v719
      %v724 = vadd.s32 %v709, %v720
      %v725 = vadd.s32 %v710, %v721
      %v726 = vadd.s32 %v711, %v722
      %vm727 = vcmp.ge.s32.totalorder %v290, 96
      %v728 = vsel %vm727, 1, 0
      %v729 = vadd.s32 %v714, %v728
      %vm730 = vcmp.ge.s32.totalorder %v290, 384
      %vm731 = vcmp.ge.s32.totalorder %v699, 384
      %vm732 = vcmp.ge.s32.totalorder %v700, 384
      %vm733 = vcmp.ge.s32.totalorder %v701, 384
      %v734 = vsel %vm730, 1, 0
      %v735 = vsel %vm731, 1, 0
      %v736 = vsel %vm732, 1, 0
      %v737 = vsel %vm733, 1, 0
      %v738 = vadd.s32 %v723, %v734
      %v739 = vadd.s32 %v724, %v735
      %v740 = vadd.s32 %v725, %v736
      %v741 = vadd.s32 %v726, %v737
      %v742 = vmul.u32 %v697, 4
      %v743 = vmul.u32 %v698, 4
      %v744 = vadd.s32 %v742, %v729
      %v745 = vadd.s32 %v743, %v729
      %vm746 = vcmp.lt.s32.totalorder %v744, 16
      %vm747 = vcmp.lt.s32.totalorder %v745, 16
      %v748 = vadd.s32 %v742, %v738
      %v749 = vadd.s32 %v742, %v739
      %v750 = vadd.s32 %v742, %v740
      %v751 = vadd.s32 %v742, %v741
      %v752 = vadd.s32 %v743, %v738
      %v753 = vadd.s32 %v743, %v739
      %v754 = vadd.s32 %v743, %v740
      %v755 = vadd.s32 %v743, %v741
      %vm756 = vcmp.lt.s32.totalorder %v748, 16
      %vm757 = vcmp.lt.s32.totalorder %v749, 16
      %vm758 = vcmp.lt.s32.totalorder %v750, 16
      %vm759 = vcmp.lt.s32.totalorder %v751, 16
      %vm760 = vcmp.lt.s32.totalorder %v752, 16
      %vm761 = vcmp.lt.s32.totalorder %v753, 16
      %vm762 = vcmp.lt.s32.totalorder %v754, 16
      %vm763 = vcmp.lt.s32.totalorder %v755, 16
      %v764 = vsel %vm756, 1, 0
      %v765 = vsel %vm757, 1, 0
      %v766 = vsel %vm758, 1, 0
      %v767 = vsel %vm759, 1, 0
      %v768 = vsel %vm760, 1, 0
      %v769 = vsel %vm761, 1, 0
      %v770 = vsel %vm762, 1, 0
      %v771 = vsel %vm763, 1, 0
      %v772 = vcvt.s32.f32 %v764
      %v773 = vcvt.s32.f32 %v765
      %v774 = vcvt.s32.f32 %v766
      %v775 = vcvt.s32.f32 %v767
      %v776 = vcvt.s32.f32 %v768
      %v777 = vcvt.s32.f32 %v769
      %v778 = vcvt.s32.f32 %v770
      %v779 = vcvt.s32.f32 %v771
      %v780 = vsub.f32 %v610, %v113
      %v781 = vsub.f32 %v613, %v114
      %v782 = vsel %vm746, %v780, 0.0
      %v783 = vsel %vm747, %v781, 0.0
      %v784 = vmul.f32 %v331, %v772
      %v785 = vmul.f32 %v373, %v773
      %v786 = vmul.f32 %v415, %v774
      %v787 = vmul.f32 %v457, %v775
      %v788 = vmul.f32 %v332, %v776
      %v789 = vmul.f32 %v374, %v777
      %v790 = vmul.f32 %v416, %v778
      %v791 = vmul.f32 %v458, %v779
      %v792 = vld [vmem:[#allocation11] ss:$8 sm:$0xf]
      %v793 = vadd.f32 %v784, %v788
      %v794 = vrot.slane %v793, 4
      %v795 = vadd.f32 %v793, %v794
      %v796 = vrot.slane %v795, 2
      %v797 = vadd.f32 %v795, %v796
      %v798 = vrot.slane %v797, 1
      %v799 = vadd.f32 %v797, %v798
      %v800 = vadd.f32 %v785, %v789
      %v801 = vrot.slane %v800, 4
      %v802 = vadd.f32 %v800, %v801
      %v803 = vrot.slane %v802, 2
      %v804 = vadd.f32 %v802, %v803
      %v805 = vrot.slane %v804, 1
      %v806 = vadd.f32 %v804, %v805
      %v807 = vadd.f32 %v786, %v790
      %v808 = vrot.slane %v807, 4
      %v809 = vadd.f32 %v807, %v808
      %v810 = vrot.slane %v809, 2
      %v811 = vadd.f32 %v809, %v810
      %v812 = vrot.slane %v811, 1
      %v813 = vadd.f32 %v811, %v812
      %v814 = vadd.f32 %v787, %v791
      %v815 = vrot.slane %v814, 4
      %v816 = vadd.f32 %v814, %v815
      %v817 = vrot.slane %v816, 2
      %v818 = vadd.f32 %v816, %v817
      %v819 = vrot.slane %v818, 1
      %v820 = vadd.f32 %v818, %v819
      %v825 = vrot.slane %v806, 7
      %v826 = vrot.slane %v813, 6
      %v827 = vrot.slane %v820, 5
      %vm828 = vcmask 1040384
      %v829 = vsel %vm828, %v799, %v825
      %vm830 = vcmask 1042434
      %v831 = vsel %vm830, %v826, %v827
      %vm832 = vcmask 1041408
      %v833 = vsel %vm832, %v829, %v831
      %v835 = vadd.f32 %v792, %v833
      %v836 = vlaneseq
      %vm837 = vcmp.ge.s32.totalorder %v836, 0
      %vm838 = vcmp.lt.s32.totalorder %v836, 512
      %vm839 = vmand %vm837, %vm838
      %840 = vst.msk [vmem:[#allocation11] ss:$8 sm:$0xf] %vm839, %v835
      %841 = vst.msk [vmem:[#allocation11] ss:$8 sm:$0x0] %vm839, %v835
      %v842 = vmul.f32 %v782, %v782
      %v843 = vmul.f32 %v783, %v783
      %v844 = vadd.f32 %v842, %v843
      %v845 = vrot.slane %v844, 4
      %v846 = vadd.f32 %v844, %v845
      %v847 = vrot.slane %v846, 2
      %v848 = vadd.f32 %v846, %v847
      %v849 = vrot.slane %v848, 1
      %v850 = vadd.f32 %v848, %v849
      %v851 = vld [vmem:[#allocation11 + $0x1] ss:$0 sm:$0xff]
      %v852 = vadd.f32 %v851, %v850
      %853 = vst [vmem:[#allocation11 + $0x1] sm:$0x1] %v852
    $region45: #{tpu_custom_call.1} parent=1 // pred_fallthru
      _
    // Predicated region
    $region46: #{tpu_custom_call.1} parent=1 // pred_check
      _
    $region47: #{tpu_custom_call.1} parent=1 // pred_check_branch
      %855 = sbr.rel (0) target = $region49
    $region48: #{tpu_custom_call.1} parent=1 // pred_region
      %s856 = sadd.s32 0, 0
      %p857 = scmp.lt.s32.totalorder %s856, 0
      %s858 = scalar_select %p857, %s856, 0
      %s859 = smul.u32 4, %s858
      %s860 = ssub.s32 1, %s859
      %s861 = smul.u32 4, %s860
      %s862 = ssub.s32 16, %s861
      %s863 = sshll.u32 %s862, 4
      %864 = vsyncadd [#allocation4], %s863
      %p865 = scmp.ne.s32.totalorder 0, %s861
      %s866 = smul.addr %s859, 4
      %s867 = scalar_lea.hbm %s4, %s866
      %s868 = smul.u32 4, %s860
      %s869 = sshll.u32 [#allocation10], 4
      %s870 = int_to_ptr.vmem [resolvable:$true] %s869
      %s871 = sshll.u32 %s867, 4
      %s872 = int_to_ptr.hbm [resolvable:$true] %s871
      %s873 = sshll.u32 %s868, 4
      %877 = dma.vmem_to_hbm [thread:$0]  (%p865), %s870, %s873, %s872, [#allocation4], 64, 64, 4
    $region49: #{tpu_custom_call.1} parent=1 // pred_fallthru
      _
    // Predicated region
    $region50: #{tpu_custom_call.1} parent=1 // pred_check
      _
    $region51: #{tpu_custom_call.1} parent=1 // pred_check_branch
      %879 = sbr.rel (0) target = $region53
    $region52: #{tpu_custom_call.1} parent=1 // pred_region
      %881 = vsyncadd [#allocation12], 0
      %s883 = sshll.u32 [#allocation11], 4
      %s884 = int_to_ptr.vmem [resolvable:$true] %s883
      %s885 = sshll.u32 %s5, 4
      %s886 = int_to_ptr.hbm [resolvable:$true] %s885
      %888 = dma.vmem_to_hbm [thread:$0]  %s884, 512, %s886, [#allocation12]
    $region53: #{tpu_custom_call.1} parent=1 // pred_fallthru
      _
    // Predicated region
    $region54: #{tpu_custom_call.1} parent=1 // pred_check
      _
    $region55: #{tpu_custom_call.1} parent=1 // pred_check_branch
      %890 = sbr.rel (0) target = $region57
    $region56: #{tpu_custom_call.1} parent=1 // pred_region
      %892 = dma.done [#allocation4], 256
    $region57: #{tpu_custom_call.1} parent=1 // pred_fallthru
      _
    // Predicated region
    $region58: #{tpu_custom_call.1} parent=1 // pred_check
      _
    $region59: #{tpu_custom_call.1} parent=1 // pred_check_branch
      %894 = sbr.rel (0) target = $region61
    $region60: #{tpu_custom_call.1} parent=1 // pred_region
      %896 = dma.done [#allocation12], 512
    $region61: #{tpu_custom_call.1} parent=1 // pred_fallthru
      _
    %897 = vsyncpa [#allocation3], 1
    %898 = vsyncpa [#allocation6], 1
    %899 = vsyncpa [#allocation9], 1
    %900 = vsyncpa [#allocation4], 1
    %901 = vsyncpa [#allocation12], 1

</llo_original>
